<compile_context>
chip_gen: v7x
topology: tpu7x:2x2x1
jax: 0.10.0
libtpu: 0.0.40
codegen_flags: <defaults>
</compile_context>

<pallas_src>
import functools

import jax
import jax.numpy as jnp
from jax.experimental import pallas as pl
from jax.experimental.pallas import tpu as pltpu


# ---------------------------------------------------------------------------
# Generation-aware VMEM limit (leave headroom; never hard-code 64/128 MiB).
# ---------------------------------------------------------------------------
@functools.lru_cache(maxsize=None)
def _vmem_limit_bytes():
    cap = 64 * 1024 * 1024  # conservative fallback (v7x physical VMEM per TC)
    try:
        info = pltpu.get_tpu_info()
        cap_attr = getattr(info, "vmem_capacity_bytes", None)
        if cap_attr:
            cap = int(cap_attr)
    except Exception:
        pass
    return max(32 * 1024 * 1024, (cap * 3) // 4)


def _compiler_params(dimension_semantics):
    return pltpu.CompilerParams(
        dimension_semantics=dimension_semantics,
        vmem_limit_bytes=_vmem_limit_bytes(),
    )


def _const_spec(shape, index_map):
    """BlockSpec for grid-invariant operands; single-buffered when supported."""
    try:
        return pl.BlockSpec(shape, index_map, pipeline_mode=pl.Buffered(1))
    except Exception:  # older Pallas without pipeline_mode / Buffered
        return pl.BlockSpec(shape, index_map)


def _largest_divisor(n, cap):
    for d in range(min(cap, n), 0, -1):
        if n % d == 0:
            return d
    return 1


# ---------------------------------------------------------------------------
# Fused 3x3 conv + folded BN + ReLU (direct conv, optional fused skip input)
# ---------------------------------------------------------------------------
def _conv3x3_kernel(*refs, tile_h, width, relu, two):
    """One TILE_H-row band of output per grid step.  The padded activations
    are resident per image; the 3x3 taps are accumulated as 9 bf16 dots into
    one f32 accumulator (weights pre-split into 9 (Cin, Cout) slabs)."""
    if two:
        xa_ref, xb_ref, wa_ref, wb_ref, sh_ref, o_ref = refs
        pairs = ((xa_ref, wa_ref), (xb_ref, wb_ref))
    else:
        xa_ref, wa_ref, sh_ref, o_ref = refs
        pairs = ((xa_ref, wa_ref),)

    cout = o_ref.shape[-1]
    row0 = pl.multiple_of(pl.program_id(1) * tile_h, tile_h)
    shift = sh_ref[...]  # (1, cout) f32

    # Load the (tile_h + 2)-row band of each padded operand once per step.
    bands = [x_ref[pl.ds(row0, tile_h + 2)] for x_ref, _ in pairs]  # bf16

    # TODO(synk): flatten the im2col M dim to tile_h*width (one large MXU dot)
    # once in-kernel value reshape across the sublane dim is verified; the
    # per-output-row accumulation below keeps M = width per dot.
    for r in range(tile_h):
        acc = jnp.zeros((width, cout), jnp.float32)
        for (_, w_ref), band in zip(pairs, bands):
            for kh in range(3):
                for kw in range(3):
                    patch = band[r + kh, kw:kw + width, :]        # (width, cin) bf16
                    acc = acc + jnp.dot(patch, w_ref[3 * kh + kw],
                                        preferred_element_type=jnp.float32)
        y = acc + shift
        if relu:
            y = jnp.maximum(y, 0.0)
        o_ref[r] = y.astype(o_ref.dtype)


def conv3x3_bn_relu(xa, xb, p, out_dtype=jnp.bfloat16, row_tile_cap=8):
    """xa: (N,H,W,Ca) main input.  xb: optional (N,H,W,Cb) skip input.
    Split weight rows are mathematically identical to
    conv(concat([xa, xb], channel=-1)); the concat is never materialized.
    BN scale is pre-folded into the weights; only `shift` is added here."""
    N, H, W, Ca = xa.shape
    Cout = p["wa"].shape[-1]
    tile_h = _largest_divisor(H, row_tile_cap)
    Hp, Wp = H + 2, W + 2

    # NOTE: the explicit pad is one extra HBM copy per stage (small tensors);
    # kept for simplicity instead of in-kernel boundary masking.
    xa_p = jnp.pad(xa.astype(jnp.bfloat16), ((0, 0), (1, 1), (1, 1), (0, 0)))

    args = [xa_p]
    in_specs = [pl.BlockSpec((None, Hp, Wp, Ca), lambda n, t: (n, 0, 0, 0))]

    two = xb is not None
    if two:
        Cb = xb.shape[-1]
        xb_p = jnp.pad(xb.astype(jnp.bfloat16),
                       ((0, 0), (1, 1), (1, 1), (0, 0)))
        args.append(xb_p)
        in_specs.append(pl.BlockSpec((None, Hp, Wp, Cb),
                                     lambda n, t: (n, 0, 0, 0)))

    # Grid-invariant operands: single-buffered (frees VMEM, esp. dec3 on v7x).
    args.append(p["wa"])
    in_specs.append(_const_spec(p["wa"].shape, lambda n, t: (0, 0, 0)))
    if two:
        args.append(p["wb"])
        in_specs.append(_const_spec(p["wb"].shape, lambda n, t: (0, 0, 0)))
    args.append(p["shift"])
    in_specs.append(_const_spec(p["shift"].shape, lambda n, t: (0, 0)))

    return pl.pallas_call(
        functools.partial(_conv3x3_kernel, tile_h=tile_h, width=W,
                          relu=True, two=two),
        out_shape=jax.ShapeDtypeStruct((N, H, W, Cout), out_dtype),
        grid_spec=pltpu.PrefetchScalarGridSpec(
            num_scalar_prefetch=0,
            grid=(N, H // tile_h),
            in_specs=in_specs,
            out_specs=pl.BlockSpec((None, tile_h, W, Cout),
                                   lambda n, t: (n, t, 0, 0)),
        ),
        compiler_params=_compiler_params(("parallel", "parallel")),
    )(*args)


# ---------------------------------------------------------------------------
# Generic fused matmul + bias (+ReLU): patch-embed / patch-merge / 1x1 conv
# ---------------------------------------------------------------------------
def _matmul_bias_kernel(a_ref, b_ref, bias_ref, o_ref, *, relu):
    y = jnp.dot(a_ref[...], b_ref[...], preferred_element_type=jnp.float32)
    y = y + bias_ref[...]
    if relu:
        y = jnp.maximum(y, 0.0)
    o_ref[...] = y.astype(o_ref.dtype)


def matmul_bias(a, b, bias, relu=False, out_dtype=jnp.bfloat16, tm=512):
    """(M,K)@(K,N)+bias with bf16 operands / f32 accumulation and an M-tiled
    'parallel' grid so VMEM stays bounded at any image resolution."""
    M, K = a.shape
    K2, Ncols = b.shape
    assert K == K2
    a = a.astype(jnp.bfloat16)
    b = b.astype(jnp.bfloat16)
    bias2 = bias.reshape(1, Ncols).astype(jnp.float32)

    if M <= tm:
        tm_eff, Mp, a_p = M, M, a
    else:
        tm_eff = tm
        Mp = ((M + tm - 1) // tm) * tm
        a_p = jnp.pad(a, ((0, Mp - M), (0, 0))) if Mp != M else a

    out = pl.pallas_call(
        functools.partial(_matmul_bias_kernel, relu=relu),
        out_shape=jax.ShapeDtypeStruct((Mp, Ncols), out_dtype),
        grid_spec=pltpu.PrefetchScalarGridSpec(
            num_scalar_prefetch=0,
            grid=(Mp // tm_eff,),
            in_specs=[
                pl.BlockSpec((tm_eff, K), lambda i: (i, 0)),
                _const_spec((K, Ncols), lambda i: (0, 0)),
                _const_spec((1, Ncols), lambda i: (0, 0)),
            ],
            out_specs=pl.BlockSpec((tm_eff, Ncols), lambda i: (i, 0)),
        ),
        compiler_params=_compiler_params(("parallel",)),
    )(a_p, b, bias2)
    return out[:M] if Mp != M else out


def conv1x1(x, w, bias, out_dtype=jnp.bfloat16):
    N, H, W, C = x.shape
    y = matmul_bias(x.reshape(N * H * W, C), w, bias, relu=False,
                    out_dtype=out_dtype)
    return y.reshape(N, H, W, w.shape[1])


# ---------------------------------------------------------------------------
# NHWC-resident bilinear resize (align_corners=False), row-band blocked
# ---------------------------------------------------------------------------
def _resize_kernel(i0_ref, i1_ref, hw_ref, x_ref, wm_ref, o_ref, *, tile_oh):
    """TILE_OH output rows per grid step.  Source image resident per n; row
    indices (SMEM) and fractional weights are host-precomputed; the W
    interpolation is a bf16 MXU matmul with f32 accumulation."""
    base = pl.program_id(1) * tile_oh
    wm = wm_ref[...]                                     # (out_w, W) bf16
    for r in range(tile_oh):
        o = base + r
        i0 = i0_ref[o]
        i1 = i1_ref[o]
        w1 = hw_ref[pl.ds(o, 1), :]                      # (1, 1) f32
        r0 = x_ref[i0].astype(jnp.float32)               # (W, C)
        r1 = x_ref[i1].astype(jnp.float32)
        row = r0 + (r1 - r0) * w1                        # f32 blend (VPU)
        out_row = jnp.dot(wm, row.astype(jnp.bfloat16),
                          preferred_element_type=jnp.float32)
        o_ref[r] = out_row.astype(o_ref.dtype)


def _interp_coeffs(out_size, in_size):
    """Half-pixel (align_corners=False) source indices / fractions."""
    scale = in_size / out_size
    pos = (jnp.arange(out_size, dtype=jnp.float32) + 0.5) * scale - 0.5
    pos = jnp.clip(pos, 0.0, float(in_size - 1))
    i0 = jnp.floor(pos).astype(jnp.int32)
    i1 = jnp.minimum(i0 + 1, in_size - 1)
    w1 = (pos - i0.astype(jnp.float32)).reshape(out_size, 1)
    return i0, i1, w1


def _interp_matrix(out_size, in_size):
    if out_size == in_size:
        return jnp.eye(out_size, dtype=jnp.float32)
    i0, i1, w1 = _interp_coeffs(out_size, in_size)
    w1 = w1[:, 0]
    rows = jnp.arange(out_size)
    m = jnp.zeros((out_size, in_size), jnp.float32)
    m = m.at[rows, i0].add(1.0 - w1)
    m = m.at[rows, i1].add(w1)
    return m


def resize_bilinear(x, out_h, out_w, out_dtype=None, row_tile_cap=16):
    """x: (N,H,W,C) -> (N,out_h,out_w,C), bilinear, align_corners=False."""
    N, H, W, C = x.shape
    if out_dtype is None:
        out_dtype = x.dtype
    if (out_h, out_w) == (H, W):
        return x.astype(out_dtype)

    i0, i1, w1 = _interp_coeffs(out_h, H)
    wm = _interp_matrix(out_w, W).astype(jnp.bfloat16)
    tile_oh = _largest_divisor(out_h, row_tile_cap)
    x = x.astype(jnp.bfloat16)

    return pl.pallas_call(
        functools.partial(_resize_kernel, tile_oh=tile_oh),
        out_shape=jax.ShapeDtypeStruct((N, out_h, out_w, C), out_dtype),
        grid_spec=pltpu.PrefetchScalarGridSpec(
            num_scalar_prefetch=2,
            grid=(N, out_h // tile_oh),
            in_specs=[
                pl.BlockSpec((out_h, 1), lambda n, t, i0r, i1r: (0, 0)),
                pl.BlockSpec((None, H, W, C),
                             lambda n, t, i0r, i1r: (n, 0, 0, 0)),
                _const_spec((out_w, W), lambda n, t, i0r, i1r: (0, 0)),
            ],
            out_specs=pl.BlockSpec((None, tile_oh, out_w, C),
                                   lambda n, t, i0r, i1r: (n, t, 0, 0)),
        ),
        compiler_params=_compiler_params(("parallel", "parallel")),
    )(i0, i1, w1, x, wm)


# ---------------------------------------------------------------------------
# Synthetic backbone producing the Swin-base feature pyramid shapes
# ---------------------------------------------------------------------------
def backbone_features(x_nchw, params):
    # TODO(synk): pretrained Swin transformer blocks (window attention, MLP,
    # LayerNorm) are not translated; this synthetic patch-embed + patch-merging
    # stack only reproduces the feature-pyramid shapes/channels
    # ([128, 256, 512, 1024] at strides 4/8/16/32).
    # TODO(synk): the 4x4 patch extraction still uses XLA reshape/transpose in
    # front of the Pallas matmul instead of BlockSpec-folded gathering.
    x = jnp.transpose(x_nchw, (0, 2, 3, 1)).astype(jnp.bfloat16)  # NHWC
    N, H, W, C = x.shape
    p = x.reshape(N, H // 4, 4, W // 4, 4, C).transpose(0, 1, 3, 2, 4, 5)
    p = p.reshape(N * (H // 4) * (W // 4), 16 * C)
    f = matmul_bias(p, params["embed_w"], params["embed_b"])
    f = f.reshape(N, H // 4, W // 4, 128)
    feats = [f]
    for w, b in zip(params["merge_ws"], params["merge_bs"]):
        n, h, wd, c = f.shape
        m = f.reshape(n, h // 2, 2, wd // 2, 2, c).transpose(0, 1, 3, 2, 4, 5)
        m = m.reshape(n * (h // 2) * (wd // 2), 4 * c)
        f = matmul_bias(m, w, b).reshape(n, h // 2, wd // 2, 2 * c)
        feats.append(f)
    return feats  # f0..f3 in NHWC (bf16)


# ---------------------------------------------------------------------------
# Parameters (deterministic synthetic init; shapes follow the nn.Module)
# ---------------------------------------------------------------------------
def init_params(key, num_classes=3):
    chs = [128, 256, 512, 1024]  # swin_base_patch4_window7_224 feature_info
    keys = jax.random.split(key, 32)
    ki = iter(keys)
    eps = 1e-5

    def lin(fi, fo):
        return (jax.random.normal(next(ki), (fi, fo), jnp.float32)
                / jnp.sqrt(float(fi)))

    def conv_bn(c_up, c_skip, cout, cout_pad=None):
        cout_pad = cout if cout_pad is None else cout_pad
        cin = c_up + c_skip
        w = (jax.random.normal(next(ki), (3, 3, cin, cout), jnp.float32)
             / jnp.sqrt(9.0 * cin))
        b = jax.random.normal(next(ki), (cout,), jnp.float32) * 0.01
        gamma = jnp.ones((cout,), jnp.float32)
        beta = jnp.zeros((cout,), jnp.float32)
        mean = jnp.zeros((cout,), jnp.float32)
        var = jnp.ones((cout,), jnp.float32)
        # TODO(synk): BatchNorm folded with running stats (inference mode);
        # training-mode batch statistics are not computed.
        scale = gamma / jnp.sqrt(var + eps)
        shift = (b - mean) * scale + beta
        wf = w * scale  # fold BN scale into conv weights
        if cout_pad != cout:
            # Zero-pad Cout so stores / next-stage loads are lane-dense.
            wf = jnp.pad(wf, ((0, 0), (0, 0), (0, 0), (0, cout_pad - cout)))
            shift = jnp.pad(shift, (0, cout_pad - cout))
        wt = wf.reshape(9, cin, cout_pad)  # (tap, Cin, Cout)
        p = {"wa": wt[:, :c_up, :].astype(jnp.bfloat16),
             "shift": shift.reshape(1, cout_pad).astype(jnp.float32)}
        if c_skip > 0:
            p["wb"] = wt[:, c_up:, :].astype(jnp.bfloat16)
        return p

    # Final 1x1 conv: input padded 64->128 (dec0 lane padding), output padded
    # to 8 channels so the full-resolution resize stays small; real classes
    # are sliced at the very end.
    c_fin = max(8, ((num_classes + 7) // 8) * 8)
    fw = jax.random.normal(next(ki), (64, num_classes), jnp.float32) / 8.0
    fb = jax.random.normal(next(ki), (num_classes,), jnp.float32) * 0.01
    final_w = jnp.zeros((128, c_fin), jnp.float32).at[:64, :num_classes].set(fw)
    final_b = jnp.zeros((c_fin,), jnp.float32).at[:num_classes].set(fb)

    return {
        "embed_w": lin(48, 128).astype(jnp.bfloat16),
        "embed_b": jnp.zeros((128,), jnp.float32),
        "merge_ws": [lin(512, 256).astype(jnp.bfloat16),
                     lin(1024, 512).astype(jnp.bfloat16),
                     lin(2048, 1024).astype(jnp.bfloat16)],
        "merge_bs": [jnp.zeros((256,), jnp.float32),
                     jnp.zeros((512,), jnp.float32),
                     jnp.zeros((1024,), jnp.float32)],
        "dec3": conv_bn(chs[3], 0, 512),
        "dec2": conv_bn(512, chs[2], 256),
        "dec1": conv_bn(256, chs[1], 128),
        "dec0": conv_bn(128, chs[0], 64, cout_pad=128),
        "final_w": final_w.astype(jnp.bfloat16),
        "final_b": final_b,
        "num_classes": num_classes,
    }


# ---------------------------------------------------------------------------
# Full forward pass (mirrors SwinUNet.forward)
# ---------------------------------------------------------------------------
def swin_unet_forward(x_nchw, params):
    f0, f1, f2, f3 = backbone_features(x_nchw, params)  # NHWC bf16 features

    d3 = conv3x3_bn_relu(f3, None, params["dec3"])
    d3_up = resize_bilinear(d3, f2.shape[1], f2.shape[2])

    d2 = conv3x3_bn_relu(d3_up, f2, params["dec2"])      # fused concat+conv
    d2_up = resize_bilinear(d2, f1.shape[1], f1.shape[2])

    d1 = conv3x3_bn_relu(d2_up, f1, params["dec1"])
    d1_up = resize_bilinear(d1, f0.shape[1], f0.shape[2])

    d0 = conv3x3_bn_relu(d1_up, f0, params["dec0"])       # 128 (64 real) ch

    out = conv1x1(d0, params["final_w"], params["final_b"])  # (N,h4,w4,8ch)
    out = resize_bilinear(out, x_nchw.shape[2], x_nchw.shape[3],
                          out_dtype=jnp.float32)
    out = out[..., :params["num_classes"]]
    return jnp.transpose(out, (0, 3, 1, 2))  # back to NCHW like PyTorch


if __name__ == "__main__":
    key = jax.random.PRNGKey(0)
    kx, kp = jax.random.split(key)

    # Small input consistent with the module: NCHW, 3 input channels, spatial
    # divisible by 32 so the stride-32 feature map is non-empty.
    x = jax.random.normal(kx, (2, 3, 32, 32), jnp.float32)
    params = init_params(kp, num_classes=3)

    out = swin_unet_forward(x, params)
    out = jax.block_until_ready(out)
    assert out.shape == (2, 3, 32, 32), out.shape
    assert out.dtype == jnp.float32
    assert bool(jnp.isfinite(out).all())
    print("KERNEL_OK")
</pallas_src>

<mosaic_0001>
module attributes {stable_mosaic.version = 11 : i64} {
  func.func @_matmul_bias_kernel(%arg0: i32, %arg1: memref<128x48xbf16, #tpu.memory_space<vmem>>, %arg2: memref<48x128xbf16, #tpu.memory_space<vmem>>, %arg3: memref<1x128xf32, #tpu.memory_space<vmem>>, %arg4: memref<128x128xbf16, #tpu.memory_space<vmem>>) attributes {dimension_semantics = [#tpu.dimension_semantics<parallel>], iteration_bounds = array<i64: 1>, scalar_prefetch = 0 : i64, scratch_operands = 0 : i64, tpu.core_type = #tpu.core_type<tc>, window_params = [{transform_indices = @transform_0, window_bounds = array<i64: 128, 48>}, {pipeline_mode = #tpu.pipeline_mode<synchronous>, transform_indices = @transform_1, window_bounds = array<i64: 48, 128>}, {pipeline_mode = #tpu.pipeline_mode<synchronous>, transform_indices = @transform_2, window_bounds = array<i64: 1, 128>}, {transform_indices = @transform_3, window_bounds = array<i64: 128, 128>}]} {
    %c0 = arith.constant 0 : index
    %c0_0 = arith.constant 0 : index
    %0 = vector.load %arg1[%c0, %c0_0] : memref<128x48xbf16, #tpu.memory_space<vmem>>, vector<128x48xbf16>
    %c0_1 = arith.constant 0 : index
    %c0_2 = arith.constant 0 : index
    %1 = vector.load %arg2[%c0_1, %c0_2] : memref<48x128xbf16, #tpu.memory_space<vmem>>, vector<48x128xbf16>
    %cst = arith.constant dense<0.000000e+00> : vector<128x128xf32>
    %2 = tpu.matmul %0, %1, %cst {dimension_numbers = #tpu.dot_dimension_numbers<[1], [0], [0], [1], [0, 0, 1, 1], [], []>} : vector<128x48xbf16>, vector<48x128xbf16>, vector<128x128xf32> -> vector<128x128xf32>
    %c0_3 = arith.constant 0 : index
    %c0_4 = arith.constant 0 : index
    %3 = vector.load %arg3[%c0_3, %c0_4] : memref<1x128xf32, #tpu.memory_space<vmem>>, vector<1x128xf32>
    %4 = vector.broadcast %3 : vector<1x128xf32> to vector<128x128xf32>
    %5 = arith.addf %2, %4 : vector<128x128xf32>
    %6 = arith.truncf %5 : vector<128x128xf32> to vector<128x128xbf16>
    %c0_5 = arith.constant 0 : index
    %c0_6 = arith.constant 0 : index
    %7 = vector.load %arg4[%c0_5, %c0_6] : memref<128x128xbf16, #tpu.memory_space<vmem>>, vector<128x128xbf16>
    tpu.vector_store %arg4[%c0_5, %c0_6], %6 {strides = array<i32>} : memref<128x128xbf16, #tpu.memory_space<vmem>>, vector<128x128xbf16>,
    return
  }
  func.func @transform_0(%arg0: i32) -> (i32, i32) {
    %c0_i32 = arith.constant 0 : i32
    %c0_i32_0 = arith.constant 0 : i32
    return %arg0, %c0_i32 : i32, i32
  }
  func.func @transform_1(%arg0: i32) -> (i32, i32) {
    %c0_i32 = arith.constant 0 : i32
    %c0_i32_0 = arith.constant 0 : i32
    %c0_i32_1 = arith.constant 0 : i32
    return %c0_i32, %c0_i32_0 : i32, i32
  }
  func.func @transform_2(%arg0: i32) -> (i32, i32) {
    %c0_i32 = arith.constant 0 : i32
    %c0_i32_0 = arith.constant 0 : i32
    %c0_i32_1 = arith.constant 0 : i32
    return %c0_i32, %c0_i32_0 : i32, i32
  }
  func.func @transform_3(%arg0: i32) -> (i32, i32) {
    %c0_i32 = arith.constant 0 : i32
    %c0_i32_0 = arith.constant 0 : i32
    return %arg0, %c0_i32 : i32, i32
  }
}

</mosaic_0001>

<llo_original>
// kernel: tpu_custom_call.1
$region0: #{tpu_custom_call.1}
  #allocation0 [shape = 'u32[]', space=smem, size = 0x4, offset = 0x4, fixed_abs, tag = 'smem constant byte address 0x4 - core index']
  #allocation1 [shape = 'u32[144,128]{1,0:T(1,128)}', space=vmem, size = 0x12000, scoped, tag = 'internal scratch']
  %s0 = inlined_call_operand.vmem [shape: bf16[128,48], index: 0, kind: input, shape index: {}]
  %s1 = inlined_call_operand.vmem [shape: bf16[48,128], index: 1, kind: input, shape index: {}]
  %s2 = inlined_call_operand.vmem [shape: f32[1,128], index: 2, kind: input, shape index: {}]
  %s3 = inlined_call_operand.hbm [shape: bf16[128,128], index: 3, kind: output, shape index: {}]
  %s4 = sld [smem:[#allocation0]]
  $region22: #{tpu_custom_call.1} parent=0
    _
  %s6 = ssub.s32 1, %s4
  %s7 = scalar_select 0, %s6, %s4
  $region1: #{tpu_custom_call.1} parent=0
    #allocation2 [shape = 'u8[32768]{0}', space=vmem, size = 0x8000, scoped, tag = 'output window, operand 0, single buffered']
    #allocation3 [shape = 's32[1]{0}', space=sflag, size = 0x4, scoped, tag = 'scoped memory for tpu_custom_call.1']
    %8 = vsyncpa [#allocation3], 0
    // Predicated region
    $region2: #{tpu_custom_call.1} parent=1 // pred_check
      _
    $region3: #{tpu_custom_call.1} parent=1 // pred_check_branch
      %10 = sbr.rel (0) target = $region5
    $region4: #{tpu_custom_call.1} parent=1 // pred_region
      _
    $region5: #{tpu_custom_call.1} parent=1 // pred_fallthru
      _
    // Predicated region
    $region6: #{tpu_custom_call.1} parent=1 // pred_check
      _
    $region7: #{tpu_custom_call.1} parent=1 // pred_check_branch
      %12 = sbr.rel (0) target = $region9
    $region8: #{tpu_custom_call.1} parent=1 // pred_region
      _
    $region9: #{tpu_custom_call.1} parent=1 // pred_fallthru
      _
    // Predicated region
    $region10: #{tpu_custom_call.1} parent=1 // pred_check
      _
    $region11: #{tpu_custom_call.1} parent=1 // pred_check_branch
      %14 = sbr.rel (0) target = $region13
    $region12: #{tpu_custom_call.1} parent=1 // pred_region
      _
    $region13: #{tpu_custom_call.1} parent=1 // pred_fallthru
      _
    %v16 = vld [vmem:[%s0] sm:$0xf]
    %v17 = vld [vmem:[%s0 + $0x4] sm:$0xf]
    %v18 = vld [vmem:[%s0 + $0x8] sm:$0xf]
    %v19 = vld [vmem:[%s0 + $0xc] sm:$0xf]
    %v20 = vld [vmem:[%s0 + $0x10] sm:$0xf]
    %v21 = vld [vmem:[%s0 + $0x14] sm:$0xf]
    %v22 = vld [vmem:[%s0 + $0x18] sm:$0xf]
    %v23 = vld [vmem:[%s0 + $0x1c] sm:$0xf]
    %v24 = vld [vmem:[%s0 + $0x20] sm:$0xf]
    %v25 = vld [vmem:[%s0 + $0x24] sm:$0xf]
    %v26 = vld [vmem:[%s0 + $0x28] sm:$0xf]
    %v27 = vld [vmem:[%s0 + $0x2c] sm:$0xf]
    %v28 = vld [vmem:[%s0 + $0x30] sm:$0xf]
    %v29 = vld [vmem:[%s0 + $0x34] sm:$0xf]
    %v30 = vld [vmem:[%s0 + $0x38] sm:$0xf]
    %v31 = vld [vmem:[%s0 + $0x3c] sm:$0xf]
    %v32 = vld [vmem:[%s1] sm:$0xf]
    %v33 = vld [vmem:[%s1 + $0x4] sm:$0xf]
    %v34 = vld [vmem:[%s1 + $0x8] sm:$0xf]
    %v35 = vld [vmem:[%s1 + $0xc] sm:$0xf]
    %v36 = vld [vmem:[%s1 + $0x10] sm:$0xf]
    %v37 = vld [vmem:[%s1 + $0x14] sm:$0xf]
    %v38 = vld [vmem:[%s2] sm:$0x1]
    %v40 = vlaneseq
    %v41 = vshrl.u32 %v40, 7
    %v42 = vsub.s32 0, %v41
    %v43 = vrot.slane %v38, %v42
    %v61 = vunpack.c.l.b16 %v16
    %v62 = vunpack.c.l.b16 %v17
    %v63 = vunpack.c.l.b16 %v18
    %v64 = vunpack.c.l.b16 %v19
    %v65 = vunpack.c.l.b16 %v20
    %v66 = vunpack.c.l.b16 %v21
    %v67 = vunpack.c.l.b16 %v22
    %v68 = vunpack.c.l.b16 %v23
    %v69 = vunpack.c.l.b16 %v24
    %v70 = vunpack.c.l.b16 %v25
    %v71 = vunpack.c.l.b16 %v26
    %v72 = vunpack.c.l.b16 %v27
    %v73 = vunpack.c.l.b16 %v28
    %v74 = vunpack.c.l.b16 %v29
    %v75 = vunpack.c.l.b16 %v30
    %v76 = vunpack.c.l.b16 %v31
    %v77 = vpack.c.b16 %v62, %v61
    %v78 = vpack.c.b16 %v64, %v63
    %v79 = vpack.c.b16 %v66, %v65
    %v80 = vpack.c.b16 %v68, %v67
    %v81 = vpack.c.b16 %v70, %v69
    %v82 = vpack.c.b16 %v72, %v71
    %v83 = vpack.c.b16 %v74, %v73
    %v84 = vpack.c.b16 %v76, %v75
    %v91 = vunpack.c.l.b16 %v32
    %v92 = vunpack.c.l.b16 %v33
    %v93 = vunpack.c.l.b16 %v34
    %v94 = vunpack.c.l.b16 %v35
    %v95 = vunpack.c.l.b16 %v36
    %v96 = vunpack.c.l.b16 %v37
    %v97 = vpack.c.b16 %v92, %v91
    %v98 = vpack.c.b16 %v94, %v93
    %v99 = vpack.c.b16 %v96, %v95
    %vm103 = vcmask 392192
    %v105 = vsel %vm103, %v77, 0
    %v108 = vsel %vm103, %v78, 0
    %v111 = vsel %vm103, %v79, 0
    %v114 = vsel %vm103, %v80, 0
    %v117 = vsel %vm103, %v81, 0
    %v120 = vsel %vm103, %v82, 0
    %v123 = vsel %vm103, %v83, 0
    %v126 = vsel %vm103, %v84, 0
    %128 = vmatprep.subr.bf16.mxu0 0
    %129 = vmatpush1.bf16.msra.mxu0 %v97
    %130 = vmatprep.subr.bf16.mxu0 0
    %131 = vmatpush1.bf16.msra.mxu0 %v98
    %132 = vmatprep.subr.bf16.mxu0 0
    %133 = vmatpush1.bf16.msra.mxu0 %v99
    %134 = vmatprep.subr.bf16.mxu0 0
    %135 = vmatpush1.bf16.msra.mxu0 0
    %136 = vmatprep.subr.bf16.mxu0 0
    %137 = vmatpush1.bf16.msra.mxu0 0
    %138 = vmatprep.subr.bf16.mxu0 0
    %139 = vmatpush1.bf16.msra.mxu0 0
    %140 = vmatprep.subr.bf16.mxu0 0
    %141 = vmatpush1.bf16.msra.mxu0 0
    %142 = vmatprep.subr.bf16.mxu0 0
    %143 = vmatpush1.bf16.msra.mxu0 0
    %144 = vmatprep.subr.bf16.mxu0 0
    %145 = vmatpush1.bf16.msra.mxu0 0
    %146 = vmatprep.subr.bf16.mxu0 0
    %147 = vmatpush1.bf16.msra.mxu0 0
    %148 = vmatprep.subr.bf16.mxu0 0
    %149 = vmatpush1.bf16.msra.mxu0 0
    %150 = vmatprep.subr.bf16.mxu0 0
    %151 = vmatpush1.bf16.msra.mxu0 0
    %152 = vmatprep.subr.bf16.mxu0 0
    %153 = vmatpush1.bf16.msra.mxu0 0
    %154 = vmatprep.subr.bf16.mxu0 0
    %155 = vmatpush1.bf16.msra.mxu0 0
    %156 = vmatprep.subr.bf16.mxu0 0
    %157 = vmatpush1.bf16.msra.mxu0 0
    %158 = vmatprep.subr.bf16.mxu0 0
    %159 = vmatpush1.bf16.msra.mxu0 0
    %160 = vmatprep.mubr.bf16.mxu0 0
    %161 = vmatmul.mubr.bf16.gmra.mrb[0].mxu0 %v105
    %v162 = vpop.f32.mrb[0].mxu0
    %v163 = vadd.f32 %v43, %v162
    %v164 = vpop.f32.mrb[0].mxu0
    %v165 = vpop.f32.mrb[0].mxu0
    %v166 = vadd.f32 %v43, %v165
    %v167 = vpop.f32.mrb[0].mxu0
    %168 = vmatprep.mubr.bf16.mxu0 0
    %169 = vmatmul.mubr.bf16.gmra.mrb[0].mxu0 %v108
    %v170 = vpop.f32.mrb[0].mxu0
    %v171 = vadd.f32 %v43, %v170
    %v172 = vpop.f32.mrb[0].mxu0
    %v173 = vpop.f32.mrb[0].mxu0
    %v174 = vadd.f32 %v43, %v173
    %v175 = vpop.f32.mrb[0].mxu0
    %176 = vmatprep.mubr.bf16.mxu0 0
    %177 = vmatmul.mubr.bf16.gmra.mrb[0].mxu0 %v111
    %v178 = vpop.f32.mrb[0].mxu0
    %v179 = vadd.f32 %v43, %v178
    %v180 = vpop.f32.mrb[0].mxu0
    %v181 = vpop.f32.mrb[0].mxu0
    %v182 = vadd.f32 %v43, %v181
    %v183 = vpop.f32.mrb[0].mxu0
    %184 = vmatprep.mubr.bf16.mxu0 0
    %185 = vmatmul.mubr.bf16.gmra.mrb[0].mxu0 %v114
    %v186 = vpop.f32.mrb[0].mxu0
    %v187 = vadd.f32 %v43, %v186
    %v188 = vpop.f32.mrb[0].mxu0
    %v189 = vpop.f32.mrb[0].mxu0
    %v190 = vadd.f32 %v43, %v189
    %v191 = vpop.f32.mrb[0].mxu0
    %192 = vmatprep.mubr.bf16.mxu0 0
    %193 = vmatmul.mubr.bf16.gmra.mrb[0].mxu0 %v117
    %v194 = vpop.f32.mrb[0].mxu0
    %v195 = vadd.f32 %v43, %v194
    %v196 = vpop.f32.mrb[0].mxu0
    %v197 = vpop.f32.mrb[0].mxu0
    %v198 = vadd.f32 %v43, %v197
    %v199 = vpop.f32.mrb[0].mxu0
    %200 = vmatprep.mubr.bf16.mxu0 0
    %201 = vmatmul.mubr.bf16.gmra.mrb[0].mxu0 %v120
    %v202 = vpop.f32.mrb[0].mxu0
    %v203 = vadd.f32 %v43, %v202
    %v204 = vpop.f32.mrb[0].mxu0
    %v205 = vpop.f32.mrb[0].mxu0
    %v206 = vadd.f32 %v43, %v205
    %v207 = vpop.f32.mrb[0].mxu0
    %208 = vmatprep.mubr.bf16.mxu0 0
    %209 = vmatmul.mubr.bf16.gmra.mrb[0].mxu0 %v123
    %v210 = vpop.f32.mrb[0].mxu0
    %v211 = vadd.f32 %v43, %v210
    %v212 = vpop.f32.mrb[0].mxu0
    %v213 = vpop.f32.mrb[0].mxu0
    %v214 = vadd.f32 %v43, %v213
    %v215 = vpop.f32.mrb[0].mxu0
    %216 = vmatprep.mubr.bf16.mxu0 0
    %217 = vmatmul.mubr.bf16.gmra.mrb[0].mxu0 %v126
    %v218 = vpop.f32.mrb[0].mxu0
    %v219 = vadd.f32 %v43, %v218
    %v220 = vpop.f32.mrb[0].mxu0
    %v221 = vpop.f32.mrb[0].mxu0
    %v222 = vadd.f32 %v43, %v221
    %v223 = vpop.f32.mrb[0].mxu0
    %224 = vdwg.mxu0
    %v225 = vpack.c.bf16 %v166, %v163
    %v226 = vpack.c.bf16 %v174, %v171
    %v227 = vpack.c.bf16 %v182, %v179
    %v228 = vpack.c.bf16 %v190, %v187
    %v229 = vpack.c.bf16 %v198, %v195
    %v230 = vpack.c.bf16 %v206, %v203
    %v231 = vpack.c.bf16 %v214, %v211
    %v232 = vpack.c.bf16 %v222, %v219
    %v241 = vunpack.c.l.b16 %v225
    %v242 = vunpack.c.h.b16 %v225
    %v243 = vunpack.c.l.b16 %v226
    %v244 = vunpack.c.h.b16 %v226
    %v245 = vunpack.c.l.b16 %v227
    %v246 = vunpack.c.h.b16 %v227
    %v247 = vunpack.c.l.b16 %v228
    %v248 = vunpack.c.h.b16 %v228
    %v249 = vunpack.c.l.b16 %v229
    %v250 = vunpack.c.h.b16 %v229
    %v251 = vunpack.c.l.b16 %v230
    %v252 = vunpack.c.h.b16 %v230
    %v253 = vunpack.c.l.b16 %v231
    %v254 = vunpack.c.h.b16 %v231
    %v255 = vunpack.c.l.b16 %v232
    %v256 = vunpack.c.h.b16 %v232
    %v257 = vpack.c.b16 %v241, %v241
    %v258 = vpack.c.b16 %v242, %v242
    %v259 = vpack.c.b16 %v243, %v243
    %v260 = vpack.c.b16 %v244, %v244
    %v261 = vpack.c.b16 %v245, %v245
    %v262 = vpack.c.b16 %v246, %v246
    %v263 = vpack.c.b16 %v247, %v247
    %v264 = vpack.c.b16 %v248, %v248
    %v265 = vpack.c.b16 %v249, %v249
    %v266 = vpack.c.b16 %v250, %v250
    %v267 = vpack.c.b16 %v251, %v251
    %v268 = vpack.c.b16 %v252, %v252
    %v269 = vpack.c.b16 %v253, %v253
    %v270 = vpack.c.b16 %v254, %v254
    %v271 = vpack.c.b16 %v255, %v255
    %v272 = vpack.c.b16 %v256, %v256
    %289 = vst [vmem:[#allocation2] sm:$0xf] %v257
    %290 = vst [vmem:[#allocation2 + $0x4] sm:$0xf] %v258
    %291 = vst [vmem:[#allocation2 + $0x8] sm:$0xf] %v259
    %292 = vst [vmem:[#allocation2 + $0xc] sm:$0xf] %v260
    %293 = vst [vmem:[#allocation2 + $0x10] sm:$0xf] %v261
    %294 = vst [vmem:[#allocation2 + $0x14] sm:$0xf] %v262
    %295 = vst [vmem:[#allocation2 + $0x18] sm:$0xf] %v263
    %296 = vst [vmem:[#allocation2 + $0x1c] sm:$0xf] %v264
    %297 = vst [vmem:[#allocation2 + $0x20] sm:$0xf] %v265
    %298 = vst [vmem:[#allocation2 + $0x24] sm:$0xf] %v266
    %299 = vst [vmem:[#allocation2 + $0x28] sm:$0xf] %v267
    %300 = vst [vmem:[#allocation2 + $0x2c] sm:$0xf] %v268
    %301 = vst [vmem:[#allocation2 + $0x30] sm:$0xf] %v269
    %302 = vst [vmem:[#allocation2 + $0x34] sm:$0xf] %v270
    %303 = vst [vmem:[#allocation2 + $0x38] sm:$0xf] %v271
    %304 = vst [vmem:[#allocation2 + $0x3c] sm:$0xf] %v272
    // Predicated region
    $region14: #{tpu_custom_call.1} parent=1 // pred_check
      _
    $region15: #{tpu_custom_call.1} parent=1 // pred_check_branch
      %306 = sbr.rel (0) target = $region17
    $region16: #{tpu_custom_call.1} parent=1 // pred_region
      %s308 = ssub.s32 1024, 1024
      %309 = vsyncadd [#allocation3], %s308
      %s310 = sshll.u32 [#allocation2], 4
      %s311 = int_to_ptr.vmem [resolvable:$true] %s310
      %316 = dma.vmem_to_hbm [thread:$0]  %s311, 1024, %s3, [#allocation3], 64, 64, 4
    $region17: #{tpu_custom_call.1} parent=1 // pred_fallthru
      _
    // Predicated region
    $region18: #{tpu_custom_call.1} parent=1 // pred_check
      _
    $region19: #{tpu_custom_call.1} parent=1 // pred_check_branch
      %318 = sbr.rel (0) target = $region21
    $region20: #{tpu_custom_call.1} parent=1 // pred_region
      %319 = dma.done [#allocation3], 1024
    $region21: #{tpu_custom_call.1} parent=1 // pred_fallthru
      _
    %320 = vsyncpa [#allocation3], 1

</llo_original>
